<compile_context>
chip_gen: v7x
topology: tpu7x:2x2x1
jax: 0.10.0
libtpu: 0.0.40
codegen_flags: <defaults>
</compile_context>

<pallas_src>
import functools
import math

import jax
import jax.numpy as jnp
from jax.experimental import pallas as pl
from jax.experimental.pallas import tpu as pltpu

_MIB = 1 << 20


# --------------------------------------------------------------------------------------
# Chip / tile selection helpers
# --------------------------------------------------------------------------------------
def _chip_params():
    """(preferred MXU-facing tile, physical VMEM bytes) for the local TPU generation."""
    try:
        kind = jax.devices()[0].device_kind.lower()
    except Exception:
        kind = ""
    if "v5" in kind:
        return 128, 128 * _MIB           # 4x128x128 MXU, 128 MiB VMEM
    if "v6" in kind:
        return 256, 128 * _MIB           # 2x256x256 MXU, 128 MiB VMEM
    if "v7" in kind or "7x" in kind:
        return 256, 64 * _MIB            # 2x256x256 MXU, 64 MiB VMEM per TensorCore
    return 128, 64 * _MIB                # unknown: conservative


def _candidate_tiles(total, preferred, align):
    """Descending divisor tile sizes of `total` that are multiples of `align` and <= preferred.
    Falls back to the full dimension (always a legal block)."""
    cands = []
    t = min(preferred, total)
    t -= t % align
    while t >= align:
        if total % t == 0:
            cands.append(t)
        t -= align
    if not cands:
        cands.append(total)
    return cands


def _attn_path_footprint(Bt, Tq, Lk, D, Dv, in_isz, out_isz, mask_isz):
    db = 2  # double-buffered pipeline blocks
    b = db * Bt * Tq * D * in_isz            # q block
    b += db * Bt * Lk * D * in_isz           # k block
    b += db * Bt * Lk * Dv * in_isz          # v block
    if mask_isz:
        b += db * Bt * Tq * Lk * mask_isz    # mask block
    b += db * Bt * Tq * Dv * out_isz         # out block
    b += db * Bt * Tq * Lk * out_isz         # attn block
    b += 3 * Bt * Tq * Lk * 4                # f32 scores / p / attn temporaries
    return b


def _flash_path_footprint(Bt, Tq, Tk, D, Dv, in_isz, out_isz, mask_isz):
    db = 2
    b = db * Bt * Tq * D * in_isz
    b += db * Bt * Tk * D * in_isz
    b += db * Bt * Tk * Dv * in_isz
    if mask_isz:
        b += db * Bt * Tq * Tk * mask_isz
    b += db * Bt * Tq * Dv * out_isz
    b += Bt * Tq * (2 + Dv) * 4              # m / l / acc scratch
    b += 2 * Bt * Tq * Tk * 4                # f32 s / p temporaries
    return b


def _select_bt_tq(B, Lq, footprint_fn, budget, tq_pref, max_bt=8):
    """Pick (batch_tile, q_tile) that fits `budget`; prefer >=2 grid steps (megacore), then
    the largest per-step work. Falls back to the smallest-footprint config."""
    bt_cands = [d for d in range(min(B, max_bt), 0, -1) if B % d == 0]
    tq_cands = _candidate_tiles(Lq, tq_pref, 8)
    best = None
    smallest = None
    for bt in bt_cands:
        for tq in tq_cands:
            fp = footprint_fn(bt, tq)
            steps = (B // bt) * (Lq // tq)
            if smallest is None or fp < smallest[0]:
                smallest = (fp, bt, tq)
            if fp <= budget:
                key = (steps >= 2, bt * tq, -fp)
                if best is None or key > best[0]:
                    best = (key, bt, tq, fp)
    if best is not None:
        return best[1], best[2], best[3]
    return smallest[1], smallest[2], smallest[0]


# --------------------------------------------------------------------------------------
# Kernels
# --------------------------------------------------------------------------------------
def _mask_pred(m):
    return m if m.dtype == jnp.bool_ else (m != 0)


def _sdpa_attn_kernel(*refs, inv_temperature, has_mask, compute_bf16):
    """Per (batch-tile, q-tile) step with full Lk: returns normalized attn and output."""
    if has_mask:
        q_ref, k_ref, v_ref, mask_ref, out_ref, attn_ref = refs
    else:
        q_ref, k_ref, v_ref, out_ref, attn_ref = refs
        mask_ref = None

    q = q_ref[...]                                        # (Bt, Tq, D)
    k = k_ref[...]                                        # (Bt, Lk, D)
    v = v_ref[...]                                        # (Bt, Lk, Dv)

    # Fold 1/temperature into q (Tq*D multiplies instead of Tq*Lk on the score matrix).
    q = q * jnp.asarray(inv_temperature, dtype=q.dtype)
    if compute_bf16:
        q = q.astype(jnp.bfloat16)
        k = k.astype(jnp.bfloat16)

    # Batched contraction over D (no explicit transpose -> no XLU relayout), f32 accumulate.
    scores = jnp.einsum("bqd,bkd->bqk", q, k,
                        preferred_element_type=jnp.float32)      # (Bt, Tq, Lk)

    if has_mask:
        scores = jnp.where(_mask_pred(mask_ref[...]),
                           jnp.float32(-10000000000.0), scores)

    # Numerically stable softmax (f32); EUP approximate reciprocal + one Newton step.
    row_max = jnp.max(scores, axis=-1, keepdims=True)
    p = jnp.exp(scores - row_max)
    denom = jnp.sum(p, axis=-1, keepdims=True)
    r = pl.reciprocal(denom, approx=True)
    r = r * (2.0 - denom * r)
    attn = p * r

    # TODO(synk): nn.Dropout(0.1) is treated as identity (eval-mode semantics); training-mode
    # dropout would use pltpu.prng_seed / pltpu.prng_random_bits here.

    out = jnp.einsum("bqk,bkd->bqd", attn.astype(v.dtype), v,
                     preferred_element_type=jnp.float32)

    out_ref[...] = out.astype(out_ref.dtype)
    attn_ref[...] = attn.astype(attn_ref.dtype)


def _sdpa_flash_kernel(*refs, inv_temperature, has_mask, compute_bf16):
    """Flash-attention structure (Lk tiled, online softmax); output only, no attn writeback."""
    if has_mask:
        q_ref, k_ref, v_ref, mask_ref, out_ref, m_sc, l_sc, acc_sc = refs
    else:
        q_ref, k_ref, v_ref, out_ref, m_sc, l_sc, acc_sc = refs
        mask_ref = None

    kv = pl.program_id(2)

    @pl.when(kv == 0)
    def _():
        m_sc[...] = jnp.full_like(m_sc, -jnp.inf)
        l_sc[...] = jnp.zeros_like(l_sc)
        acc_sc[...] = jnp.zeros_like(acc_sc)

    q = q_ref[...]
    k = k_ref[...]
    v = v_ref[...]
    q = q * jnp.asarray(inv_temperature, dtype=q.dtype)
    if compute_bf16:
        q = q.astype(jnp.bfloat16)
        k = k.astype(jnp.bfloat16)

    s = jnp.einsum("bqd,bkd->bqk", q, k,
                   preferred_element_type=jnp.float32)           # (Bt, Tq, Tk)
    if has_mask:
        s = jnp.where(_mask_pred(mask_ref[...]), jnp.float32(-10000000000.0), s)

    m_prev = m_sc[...]
    m_new = jnp.maximum(m_prev, jnp.max(s, axis=-1, keepdims=True))
    alpha = jnp.exp(m_prev - m_new)
    p = jnp.exp(s - m_new)
    l_sc[...] = alpha * l_sc[...] + jnp.sum(p, axis=-1, keepdims=True)
    acc_sc[...] = alpha * acc_sc[...] + jnp.einsum(
        "bqk,bkd->bqd", p.astype(v.dtype), v, preferred_element_type=jnp.float32)
    m_sc[...] = m_new

    @pl.when(kv == pl.num_programs(2) - 1)
    def _():
        denom = l_sc[...]
        r = pl.reciprocal(denom, approx=True)
        r = r * (2.0 - denom * r)
        out_ref[...] = (acc_sc[...] * r).astype(out_ref.dtype)


# --------------------------------------------------------------------------------------
# Wrapper
# --------------------------------------------------------------------------------------
def scaled_dot_product_attention(q, k, v, mask=None, temperature=None,
                                 return_attn=True, qk_bf16=False):
    """Returns (output, attn) like the PyTorch module; attn is None if return_attn=False."""
    B, Lq, D = q.shape
    Bk, Lk, Dk = k.shape
    Bv, Lv, Dv = v.shape
    assert Dk == D and Bk == B and Bv == B and Lv == Lk

    if temperature is None:
        temperature = math.sqrt(D)
    inv_temperature = 1.0 / float(temperature)

    has_mask = mask is not None
    if has_mask:
        assert mask.shape == (B, Lq, Lk)
        # Bool / integer masks ship as-is (no wrapper-side HBM round trip); only normalize floats.
        if not (mask.dtype == jnp.bool_ or jnp.issubdtype(mask.dtype, jnp.integer)):
            mask = mask != 0
    mask_isz = jnp.dtype(mask.dtype).itemsize if has_mask else 0

    in_isz = jnp.dtype(q.dtype).itemsize
    out_isz = in_isz

    mxu, vmem_phys = _chip_params()
    tq_pref = mxu
    budget = int(0.45 * vmem_phys)          # per-step working-set target (incl. double buffers)

    if return_attn:
        fp_fn = lambda bt, tq: _attn_path_footprint(bt, tq, Lk, D, Dv, in_isz, out_isz, mask_isz)
        Bt, Tq, fp = _select_bt_tq(B, Lq, fp_fn, budget, tq_pref)
        grid = (B // Bt, Lq // Tq)

        in_specs = [
            pl.BlockSpec((Bt, Tq, D), lambda b, qi: (b, qi, 0)),
            pl.BlockSpec((Bt, Lk, D), lambda b, qi: (b, 0, 0)),
            pl.BlockSpec((Bt, Lk, Dv), lambda b, qi: (b, 0, 0)),
        ]
        inputs = [q, k, v]
        if has_mask:
            in_specs.append(pl.BlockSpec((Bt, Tq, Lk), lambda b, qi: (b, qi, 0)))
            inputs.append(mask)

        out_shape = (jax.ShapeDtypeStruct((B, Lq, Dv), q.dtype),
                     jax.ShapeDtypeStruct((B, Lq, Lk), q.dtype))
        out_specs = [pl.BlockSpec((Bt, Tq, Dv), lambda b, qi: (b, qi, 0)),
                     pl.BlockSpec((Bt, Tq, Lk), lambda b, qi: (b, qi, 0))]
        scratch = []
        dim_sem = ("parallel", "parallel")
        kernel = functools.partial(_sdpa_attn_kernel, inv_temperature=inv_temperature,
                                   has_mask=has_mask, compute_bf16=qk_bf16)
    else:
        # Flash path: Lk is tiled (reduction axis last, "arbitrary"), attn never materialized.
        tk_cands = _candidate_tiles(Lk, 2 * mxu, 128)
        Bt = Tq = Tk = fp = None
        for tk in tk_cands:
            fp_fn = lambda bt, tq, tk=tk: _flash_path_footprint(
                bt, tq, tk, D, Dv, in_isz, out_isz, mask_isz)
            Bt, Tq, fp = _select_bt_tq(B, Lq, fp_fn, budget, tq_pref)
            Tk = tk
            if fp <= budget:
                break
        grid = (B // Bt, Lq // Tq, Lk // Tk)

        in_specs = [
            pl.BlockSpec((Bt, Tq, D), lambda b, qi, ki: (b, qi, 0)),
            pl.BlockSpec((Bt, Tk, D), lambda b, qi, ki: (b, ki, 0)),
            pl.BlockSpec((Bt, Tk, Dv), lambda b, qi, ki: (b, ki, 0)),
        ]
        inputs = [q, k, v]
        if has_mask:
            in_specs.append(pl.BlockSpec((Bt, Tq, Tk), lambda b, qi, ki: (b, qi, ki)))
            inputs.append(mask)

        out_shape = jax.ShapeDtypeStruct((B, Lq, Dv), q.dtype)
        out_specs = pl.BlockSpec((Bt, Tq, Dv), lambda b, qi, ki: (b, qi, 0))
        scratch = [pltpu.VMEM((Bt, Tq, 1), jnp.float32),
                   pltpu.VMEM((Bt, Tq, 1), jnp.float32),
                   pltpu.VMEM((Bt, Tq, Dv), jnp.float32)]
        dim_sem = ("parallel", "parallel", "arbitrary")
        kernel = functools.partial(_sdpa_flash_kernel, inv_temperature=inv_temperature,
                                   has_mask=has_mask, compute_bf16=qk_bf16)

    vmem_limit = int(min(0.9 * vmem_phys, max(32 * _MIB, 1.5 * fp)))

    flops = 2 * B * Lq * Lk * (D + Dv)
    transcendentals = B * Lq * Lk
    bytes_accessed = sum(int(x.size) * jnp.dtype(x.dtype).itemsize for x in inputs)
    bytes_accessed += B * Lq * Dv * out_isz
    if return_attn:
        bytes_accessed += B * Lq * Lk * out_isz

    result = pl.pallas_call(
        kernel,
        out_shape=out_shape,
        grid_spec=pltpu.PrefetchScalarGridSpec(
            num_scalar_prefetch=0,
            grid=grid,
            in_specs=in_specs,
            out_specs=out_specs,
            scratch_shapes=scratch,
        ),
        compiler_params=pltpu.CompilerParams(
            dimension_semantics=dim_sem,
            vmem_limit_bytes=vmem_limit,
        ),
        cost_estimate=pl.CostEstimate(
            flops=flops,
            transcendentals=transcendentals,
            bytes_accessed=bytes_accessed,
        ),
    )(*inputs)

    if return_attn:
        out, attn = result
        return out, attn
    return result, None


# --------------------------------------------------------------------------------------
# Reference + self-test
# --------------------------------------------------------------------------------------
def _reference(q, k, v, mask, temperature):
    attn = jnp.einsum("bqd,bkd->bqk", q, k) / temperature
    if mask is not None:
        attn = jnp.where(mask, -10000000000.0, attn)
    attn = jax.nn.softmax(attn, axis=2)
    out = jnp.einsum("bqk,bkd->bqd", attn, v)
    return out, attn


if __name__ == "__main__":
    key = jax.random.PRNGKey(0)
    B, Lq, Lk, D, Dv = 2, 8, 8, 32, 32
    kq, kk, kv, km = jax.random.split(key, 4)

    q = jax.random.normal(kq, (B, Lq, D), dtype=jnp.float32)
    k = jax.random.normal(kk, (B, Lk, D), dtype=jnp.float32)
    v = jax.random.normal(kv, (B, Lk, Dv), dtype=jnp.float32)
    mask = jax.random.bernoulli(km, p=0.2, shape=(B, Lq, Lk))   # bool, True = masked

    temperature = math.sqrt(D)  # standard TGAT choice: sqrt(d_k)
    ref_out, ref_attn = _reference(q, k, v, mask, temperature)

    # 1) Masked path (module default usage): returns (output, attn).
    out, attn = scaled_dot_product_attention(q, k, v, mask=mask, temperature=temperature)
    out, attn = jax.block_until_ready((out, attn))
    assert jnp.allclose(out, ref_out, atol=1e-4, rtol=1e-4), "output mismatch"
    assert jnp.allclose(attn, ref_attn, atol=1e-4, rtol=1e-4), "attn mismatch"

    # 2) No-mask specialization (no score-sized mask stream is DMA'd).
    out_nm, attn_nm = scaled_dot_product_attention(q, k, v, mask=None, temperature=temperature)
    out_nm, attn_nm = jax.block_until_ready((out_nm, attn_nm))
    ref_out_nm, ref_attn_nm = _reference(q, k, v, None, temperature)
    assert jnp.allclose(out_nm, ref_out_nm, atol=1e-4, rtol=1e-4), "no-mask output mismatch"
    assert jnp.allclose(attn_nm, ref_attn_nm, atol=1e-4, rtol=1e-4), "no-mask attn mismatch"

    # 3) Flash path (return_attn=False): online softmax, Lk tiled, attn never written to HBM.
    out_only, none_attn = scaled_dot_product_attention(
        q, k, v, mask=mask, temperature=temperature, return_attn=False)
    out_only = jax.block_until_ready(out_only)
    assert none_attn is None
    assert jnp.allclose(out_only, ref_out, atol=1e-4, rtol=1e-4), "flash out mismatch"

    # 4) Opt-in bf16 QK^T path for f32 inputs (f32 accumulation); loose tolerance.
    out_bf, attn_bf = scaled_dot_product_attention(
        q, k, v, mask=mask, temperature=temperature, qk_bf16=True)
    out_bf = jax.block_until_ready(out_bf)
    assert jnp.allclose(out_bf, ref_out, atol=0.1, rtol=0.1), "bf16-QK output mismatch"

    print("KERNEL_OK")
</pallas_src>

<mosaic_0001>
module attributes {stable_mosaic.version = 11 : i64} {
  func.func @_sdpa_attn_kernel(%arg0: i32, %arg1: i32, %arg2: memref<1x8x32xf32, #tpu.memory_space<vmem>>, %arg3: memref<1x8x32xf32, #tpu.memory_space<vmem>>, %arg4: memref<1x8x32xf32, #tpu.memory_space<vmem>>, %arg5: memref<1x8x8xi32, #tpu.memory_space<vmem>>, %arg6: memref<1x8x32xf32, #tpu.memory_space<vmem>>, %arg7: memref<1x8x8xf32, #tpu.memory_space<vmem>>) attributes {dimension_semantics = [#tpu.dimension_semantics<parallel>, #tpu.dimension_semantics<parallel>], iteration_bounds = array<i64: 2, 1>, scalar_prefetch = 0 : i64, scratch_operands = 0 : i64, tpu.core_type = #tpu.core_type<tc>, window_params = [{transform_indices = @transform_0, window_bounds = array<i64: 1, 8, 32>}, {transform_indices = @transform_1, window_bounds = array<i64: 1, 8, 32>}, {transform_indices = @transform_2, window_bounds = array<i64: 1, 8, 32>}, {transform_indices = @transform_3, window_bounds = array<i64: 1, 8, 8>}, {transform_indices = @transform_4, window_bounds = array<i64: 1, 8, 32>}, {transform_indices = @transform_5, window_bounds = array<i64: 1, 8, 8>}]} {
    %c0 = arith.constant 0 : index
    %c0_0 = arith.constant 0 : index
    %c0_1 = arith.constant 0 : index
    %0 = vector.load %arg2[%c0, %c0_0, %c0_1] : memref<1x8x32xf32, #tpu.memory_space<vmem>>, vector<1x8x32xf32>
    %c0_2 = arith.constant 0 : index
    %c0_3 = arith.constant 0 : index
    %c0_4 = arith.constant 0 : index
    %1 = vector.load %arg3[%c0_2, %c0_3, %c0_4] : memref<1x8x32xf32, #tpu.memory_space<vmem>>, vector<1x8x32xf32>
    %c0_5 = arith.constant 0 : index
    %c0_6 = arith.constant 0 : index
    %c0_7 = arith.constant 0 : index
    %2 = vector.load %arg4[%c0_5, %c0_6, %c0_7] : memref<1x8x32xf32, #tpu.memory_space<vmem>>, vector<1x8x32xf32>
    %cst = arith.constant 0.176776692 : f32
    %3 = vector.broadcast %cst : f32 to vector<1x8x32xf32>
    %4 = arith.mulf %0, %3 : vector<1x8x32xf32>
    "tpu.trace_start"() <{level = 10 : i32, message = "bqd,bkd->bqk"}> : () -> ()
    %cst_8 = arith.constant dense<0.000000e+00> : vector<1x8x8xf32>
    %5 = tpu.matmul %4, %1, %cst_8 {dimension_numbers = #tpu.dot_dimension_numbers<[2], [2], [1], [1], [0, 0, 0, 1, 1, 1], [0], [0]>} : vector<1x8x32xf32>, vector<1x8x32xf32>, vector<1x8x8xf32> -> vector<1x8x8xf32>
    "tpu.trace_stop"() : () -> ()
    %c0_9 = arith.constant 0 : index
    %c0_10 = arith.constant 0 : index
    %c0_11 = arith.constant 0 : index
    %6 = vector.load %arg5[%c0_9, %c0_10, %c0_11] : memref<1x8x8xi32, #tpu.memory_space<vmem>>, vector<1x8x8xi32>
    %cst_12 = arith.constant dense<0> : vector<1x8x8xi32>
    %7 = arith.cmpi ne, %6, %cst_12 : vector<1x8x8xi32>
    %cst_13 = arith.constant -1.000000e+10 : f32
    %8 = vector.broadcast %cst_13 : f32 to vector<1x8x8xf32>
    %9 = arith.select %7, %8, %5 : vector<1x8x8xi1>, vector<1x8x8xf32>
    %cst_14 = arith.constant dense<0xFF800000> : vector<1x8xf32>
    %10 = vector.multi_reduction <maximumf>, %9, %cst_14 [2] : vector<1x8x8xf32> to vector<1x8xf32>
    %11 = vector.shape_cast %10 : vector<1x8xf32> to vector<1x8x1xf32>
    %12 = vector.broadcast %11 : vector<1x8x1xf32> to vector<1x8x8xf32>
    %13 = arith.subf %9, %12 : vector<1x8x8xf32>
    %14 = math.exp %13 : vector<1x8x8xf32>
    %cst_15 = arith.constant dense<0.000000e+00> : vector<1x8xf32>
    %15 = vector.multi_reduction <add>, %14, %cst_15 [2] : vector<1x8x8xf32> to vector<1x8xf32>
    %16 = vector.shape_cast %15 : vector<1x8xf32> to vector<1x8x1xf32>
    %17 = tpu.reciprocal %16 {approx = true} : vector<1x8x1xf32> -> vector<1x8x1xf32>
    %18 = arith.mulf %16, %17 : vector<1x8x1xf32>
    %cst_16 = arith.constant 2.000000e+00 : f32
    %19 = vector.broadcast %cst_16 : f32 to vector<1x8x1xf32>
    %20 = arith.subf %19, %18 : vector<1x8x1xf32>
    %21 = arith.mulf %17, %20 : vector<1x8x1xf32>
    %22 = vector.broadcast %21 : vector<1x8x1xf32> to vector<1x8x8xf32>
    %23 = arith.mulf %14, %22 : vector<1x8x8xf32>
    "tpu.trace_start"() <{level = 10 : i32, message = "bqk,bkd->bqd"}> : () -> ()
    %cst_17 = arith.constant dense<0.000000e+00> : vector<1x8x32xf32>
    %24 = tpu.matmul %23, %2, %cst_17 {dimension_numbers = #tpu.dot_dimension_numbers<[2], [1], [1], [2], [0, 0, 0, 1, 1, 2], [0], [0]>} : vector<1x8x8xf32>, vector<1x8x32xf32>, vector<1x8x32xf32> -> vector<1x8x32xf32>
    "tpu.trace_stop"() : () -> ()
    %c0_18 = arith.constant 0 : index
    %c0_19 = arith.constant 0 : index
    %c0_20 = arith.constant 0 : index
    %25 = vector.load %arg6[%c0_18, %c0_19, %c0_20] : memref<1x8x32xf32, #tpu.memory_space<vmem>>, vector<1x8x32xf32>
    tpu.vector_store %arg6[%c0_18, %c0_19, %c0_20], %24 {strides = array<i32>} : memref<1x8x32xf32, #tpu.memory_space<vmem>>, vector<1x8x32xf32>,
    %c0_21 = arith.constant 0 : index
    %c0_22 = arith.constant 0 : index
    %c0_23 = arith.constant 0 : index
    %26 = vector.load %arg7[%c0_21, %c0_22, %c0_23] : memref<1x8x8xf32, #tpu.memory_space<vmem>>, vector<1x8x8xf32>
    tpu.vector_store %arg7[%c0_21, %c0_22, %c0_23], %23 {strides = array<i32>} : memref<1x8x8xf32, #tpu.memory_space<vmem>>, vector<1x8x8xf32>,
    return
  }
  func.func @transform_0(%arg0: i32, %arg1: i32) -> (i32, i32, i32) {
    %c0_i32 = arith.constant 0 : i32
    %c0_i32_0 = arith.constant 0 : i32
    return %arg0, %arg1, %c0_i32 : i32, i32, i32
  }
  func.func @transform_1(%arg0: i32, %arg1: i32) -> (i32, i32, i32) {
    %c0_i32 = arith.constant 0 : i32
    %c0_i32_0 = arith.constant 0 : i32
    %c0_i32_1 = arith.constant 0 : i32
    return %arg0, %c0_i32, %c0_i32_0 : i32, i32, i32
  }
  func.func @transform_2(%arg0: i32, %arg1: i32) -> (i32, i32, i32) {
    %c0_i32 = arith.constant 0 : i32
    %c0_i32_0 = arith.constant 0 : i32
    %c0_i32_1 = arith.constant 0 : i32
    return %arg0, %c0_i32, %c0_i32_0 : i32, i32, i32
  }
  func.func @transform_3(%arg0: i32, %arg1: i32) -> (i32, i32, i32) {
    %c0_i32 = arith.constant 0 : i32
    %c0_i32_0 = arith.constant 0 : i32
    return %arg0, %arg1, %c0_i32 : i32, i32, i32
  }
  func.func @transform_4(%arg0: i32, %arg1: i32) -> (i32, i32, i32) {
    %c0_i32 = arith.constant 0 : i32
    %c0_i32_0 = arith.constant 0 : i32
    return %arg0, %arg1, %c0_i32 : i32, i32, i32
  }
  func.func @transform_5(%arg0: i32, %arg1: i32) -> (i32, i32, i32) {
    %c0_i32 = arith.constant 0 : i32
    %c0_i32_0 = arith.constant 0 : i32
    return %arg0, %arg1, %c0_i32 : i32, i32, i32
  }
}

</mosaic_0001>

<llo_original>
// kernel: tpu_custom_call.1
$region0: #{tpu_custom_call.1}
  #allocation0 [shape = 'u32[]', space=smem, size = 0x4, offset = 0x4, fixed_abs, tag = 'smem constant byte address 0x4 - core index']
  #allocation1 [shape = 'u32[144,128]{1,0:T(1,128)}', space=vmem, size = 0x12000, scoped, tag = 'internal scratch']
  %s0 = inlined_call_operand.vmem [shape: f32[2,8,32], index: 0, kind: input, shape index: {}]
  %s1 = inlined_call_operand.hbm [shape: f32[2,8,32], index: 1, kind: input, shape index: {}]
  %s2 = inlined_call_operand.hbm [shape: f32[2,8,32], index: 2, kind: input, shape index: {}]
  %s3 = inlined_call_operand.vmem [shape: s32[2,8,8], index: 3, kind: input, shape index: {}]
  %s4 = inlined_call_operand.hbm [shape: f32[2,8,32], index: 4, kind: output, shape index: {0}]
  %s5 = inlined_call_operand.hbm [shape: f32[2,8,8], index: 5, kind: output, shape index: {1}]
  %6 = xla_tuple %s4, %s5
  %s7 = sld [smem:[#allocation0]]
  $region65: #{tpu_custom_call.1} parent=0
    _
  %s9 = ssub.s32 1, %s7
  %s10 = scalar_select 0, %s9, %s7
  $region1: #{tpu_custom_call.1} parent=0
    #allocation2 [shape = 'u8[8192]{0}', space=vmem, size = 0x2000, scoped, tag = 'input window, operand 1']
    #allocation3 [shape = 's32[2]{0}', space=sflag, size = 0x8, scoped, tag = 'scoped memory for tpu_custom_call.1']
    #allocation4 [shape = 's32[2]{0}', space=sflag, size = 0x8, scoped, tag = 'scoped memory for tpu_custom_call.1']
    #allocation5 [shape = 'u8[8192]{0}', space=vmem, size = 0x2000, scoped, tag = 'input window, operand 2']
    #allocation6 [shape = 's32[2]{0}', space=sflag, size = 0x8, scoped, tag = 'scoped memory for tpu_custom_call.1']
    #allocation7 [shape = 'u8[8192]{0}', space=vmem, size = 0x2000, scoped, tag = 'output window, operand 0']
    #allocation8 [shape = 'u8[8192]{0}', space=vmem, size = 0x2000, scoped, tag = 'output window, operand 1']
    #allocation9 [shape = 's32[2]{0}', space=sflag, size = 0x8, scoped, tag = 'scoped memory for tpu_custom_call.1']
    %11 = vsyncpa [#allocation3], 0
    %s12 = scalar_lea.sflag [#allocation3], 1
    %13 = vsyncpa %s12, 0
    %14 = vsyncpa [#allocation6], 0
    %s15 = scalar_lea.sflag [#allocation6], 1
    %16 = vsyncpa %s15, 0
    %17 = vsyncpa [#allocation4], 0
    %s18 = scalar_lea.sflag [#allocation4], 1
    %19 = vsyncpa %s18, 0
    %20 = vsyncpa [#allocation9], 0
    %s21 = scalar_lea.sflag [#allocation9], 1
    %22 = vsyncpa %s21, 0
    loop: start=0, step=1, limit=4
    $region2: #{tpu_custom_call.1} parent=1 // loop_pre_header
      _
    $region3: #{tpu_custom_call.1} parent=1 // loop_header
      %s24 = sphi 0, %s28
      %p25 = scmp.ge.s32.totalorder %s24, 4
      %s31 = sphi 0, %s43
      %s32 = sphi 0, %s39
      %s33 = sphi 0, %s31
      %s34 = sphi 0, %s32
      %s35 = sphi 0, %s33
      %s36 = sphi 0, %s34
      %s48 = sphi 0, %s50
      %s51 = sphi 0, %s48
      %s52 = sphi 0, %s51
      %s68 = sphi 0, %s52
      %s74 = sphi 0, %s76
      %s77 = sphi 0, %s74
      %s78 = sphi 0, %s77
      %s94 = sphi 0, %s78
      %s100 = sphi 0, %s102
      %s103 = sphi 0, %s100
      %s104 = sphi 0, %s103
      %s120 = sphi 0, %s104
      %s128 = sphi 0, %s130
      %s131 = sphi 0, %s128
      %s132 = sphi 0, %s131
      %s148 = sphi 0, %s132
      %s156 = sphi 0, %s158
      %s159 = sphi 0, %s156
      %s160 = sphi 0, %s159
      %s176 = sphi 0, %s160
      %s184 = sphi 0, %s186
      %s187 = sphi 0, %s184
      %s188 = sphi 0, %s187
      %s204 = sphi 0, %s188
    $region4: #{tpu_custom_call.1} parent=1 // loop_header_branch
      %27 = sbr.rel (%p25) target = $region8
    $region5: #{tpu_custom_call.1} parent=1 // loop_body
      %s29 = ssub.s32 %s24, 1
      %s30 = ssub.s32 %s24, 2
      %s37 = sadd.s32 1, %s32
      %p38 = scmp.ge.s32.totalorder %s37, 1
      %s39 = scalar_select %p38, 0, %s37
      %s40 = sadd.s32 1, %s31
      %s41 = scalar_select %p38, %s40, %s31
      %p42 = scmp.ge.s32.totalorder %s41, 2
      %s43 = scalar_select %p42, 0, %s41
      %s44 = ssub.s32 %s31, %s43
      %s45 = ssub.s32 %s32, %s39
      %s46 = sor.u32 %s44, %s45
      %p47 = scmp.eq.s32.totalorder %s46, 0
      %s49 = sadd.s32 %s48, 1
      %s50 = scalar_select %p47, %s48, %s49
      %p53 = pneg %p47
      %p54 = scmp.eq.s32.totalorder %s24, 1
      %p55 = por %p53, %p54
      %p56 = scmp.ne.s32.totalorder %s48, %s51
      %p57 = scmp.eq.s32.totalorder %s24, 0
      %p58 = por %p56, %p57
      %p59 = scmp.ne.s32.totalorder %s48, %s51
      %p60 = scmp.eq.s32.totalorder %s29, 1
      %p61 = por %p59, %p60
      %p62 = scmp.ne.s32.totalorder %s51, %s52
      %p63 = scmp.eq.s32.totalorder %s29, 0
      %p64 = por %p62, %p63
      %p65 = scmp.ne.s32.totalorder %s51, %s52
      %p66 = scmp.eq.s32.totalorder %s30, 1
      %p67 = por %p65, %p66
      %p69 = scmp.ne.s32.totalorder %s52, %s68
      %p70 = scmp.eq.s32.totalorder %s30, 0
      %p71 = por %p69, %p70
      %s72 = ssub.s32 %s31, %s43
      %p73 = scmp.eq.s32.totalorder %s72, 0
      %s75 = sadd.s32 %s74, 1
      %s76 = scalar_select %p73, %s74, %s75
      %p79 = pneg %p73
      %p80 = scmp.eq.s32.totalorder %s24, 1
      %p81 = por %p79, %p80
      %p82 = scmp.ne.s32.totalorder %s74, %s77
      %p83 = scmp.eq.s32.totalorder %s24, 0
      %p84 = por %p82, %p83
      %p85 = scmp.ne.s32.totalorder %s74, %s77
      %p86 = scmp.eq.s32.totalorder %s29, 1
      %p87 = por %p85, %p86
      %p88 = scmp.ne.s32.totalorder %s77, %s78
      %p89 = scmp.eq.s32.totalorder %s29, 0
      %p90 = por %p88, %p89
      %p91 = scmp.ne.s32.totalorder %s77, %s78
      %p92 = scmp.eq.s32.totalorder %s30, 1
      %p93 = por %p91, %p92
      %p95 = scmp.ne.s32.totalorder %s78, %s94
      %p96 = scmp.eq.s32.totalorder %s30, 0
      %p97 = por %p95, %p96
      %s98 = ssub.s32 %s31, %s43
      %p99 = scmp.eq.s32.totalorder %s98, 0
      %s101 = sadd.s32 %s100, 1
      %s102 = scalar_select %p99, %s100, %s101
      %p105 = pneg %p99
      %p106 = scmp.eq.s32.totalorder %s24, 1
      %p107 = por %p105, %p106
      %p108 = scmp.ne.s32.totalorder %s100, %s103
      %p109 = scmp.eq.s32.totalorder %s24, 0
      %p110 = por %p108, %p109
      %p111 = scmp.ne.s32.totalorder %s100, %s103
      %p112 = scmp.eq.s32.totalorder %s29, 1
      %p113 = por %p111, %p112
      %p114 = scmp.ne.s32.totalorder %s103, %s104
      %p115 = scmp.eq.s32.totalorder %s29, 0
      %p116 = por %p114, %p115
      %p117 = scmp.ne.s32.totalorder %s103, %s104
      %p118 = scmp.eq.s32.totalorder %s30, 1
      %p119 = por %p117, %p118
      %p121 = scmp.ne.s32.totalorder %s104, %s120
      %p122 = scmp.eq.s32.totalorder %s30, 0
      %p123 = por %p121, %p122
      %s124 = ssub.s32 %s31, %s43
      %s125 = ssub.s32 %s32, %s39
      %s126 = sor.u32 %s124, %s125
      %p127 = scmp.eq.s32.totalorder %s126, 0
      %s129 = sadd.s32 %s128, 1
      %s130 = scalar_select %p127, %s128, %s129
      %p133 = pneg %p127
      %p134 = scmp.eq.s32.totalorder %s24, 1
      %p135 = por %p133, %p134
      %p136 = scmp.ne.s32.totalorder %s128, %s131
      %p137 = scmp.eq.s32.totalorder %s24, 0
      %p138 = por %p136, %p137
      %p139 = scmp.ne.s32.totalorder %s128, %s131
      %p140 = scmp.eq.s32.totalorder %s29, 1
      %p141 = por %p139, %p140
      %p142 = scmp.ne.s32.totalorder %s131, %s132
      %p143 = scmp.eq.s32.totalorder %s29, 0
      %p144 = por %p142, %p143
      %p145 = scmp.ne.s32.totalorder %s131, %s132
      %p146 = scmp.eq.s32.totalorder %s30, 1
      %p147 = por %p145, %p146
      %p149 = scmp.ne.s32.totalorder %s132, %s148
      %p150 = scmp.eq.s32.totalorder %s30, 0
      %p151 = por %p149, %p150
      %s152 = ssub.s32 %s31, %s43
      %s153 = ssub.s32 %s32, %s39
      %s154 = sor.u32 %s152, %s153
      %p155 = scmp.eq.s32.totalorder %s154, 0
      %s157 = sadd.s32 %s156, 1
      %s158 = scalar_select %p155, %s156, %s157
      %p161 = pneg %p155
      %p162 = scmp.eq.s32.totalorder %s24, 1
      %p163 = por %p161, %p162
      %p164 = scmp.ne.s32.totalorder %s156, %s159
      %p165 = scmp.eq.s32.totalorder %s24, 0
      %p166 = por %p164, %p165
      %p167 = scmp.ne.s32.totalorder %s156, %s159
      %p168 = scmp.eq.s32.totalorder %s29, 1
      %p169 = por %p167, %p168
      %p170 = scmp.ne.s32.totalorder %s159, %s160
      %p171 = scmp.eq.s32.totalorder %s29, 0
      %p172 = por %p170, %p171
      %p173 = scmp.ne.s32.totalorder %s159, %s160
      %p174 = scmp.eq.s32.totalorder %s30, 1
      %p175 = por %p173, %p174
      %p177 = scmp.ne.s32.totalorder %s160, %s176
      %p178 = scmp.eq.s32.totalorder %s30, 0
      %p179 = por %p177, %p178
      %s180 = ssub.s32 %s31, %s43
      %s181 = ssub.s32 %s32, %s39
      %s182 = sor.u32 %s180, %s181
      %p183 = scmp.eq.s32.totalorder %s182, 0
      %s185 = sadd.s32 %s184, 1
      %s186 = scalar_select %p183, %s184, %s185
      %p189 = pneg %p183
      %p190 = scmp.eq.s32.totalorder %s24, 1
      %p191 = por %p189, %p190
      %p192 = scmp.ne.s32.totalorder %s184, %s187
      %p193 = scmp.eq.s32.totalorder %s24, 0
      %p194 = por %p192, %p193
      %p195 = scmp.ne.s32.totalorder %s184, %s187
      %p196 = scmp.eq.s32.totalorder %s29, 1
      %p197 = por %p195, %p196
      %p198 = scmp.ne.s32.totalorder %s187, %s188
      %p199 = scmp.eq.s32.totalorder %s29, 0
      %p200 = por %p198, %p199
      %p201 = scmp.ne.s32.totalorder %s187, %s188
      %p202 = scmp.eq.s32.totalorder %s30, 1
      %p203 = por %p201, %p202
      %p205 = scmp.ne.s32.totalorder %s188, %s204
      %p206 = scmp.eq.s32.totalorder %s30, 0
      %p207 = por %p205, %p206
      %p208 = scmp.le.s32.totalorder 1, %s24
      %p209 = scmp.lt.s32.totalorder %s24, 3
      %p210 = pnand %p208, %p209
      %p211 = pneg %p210
      // Predicated region
      $region9: #{tpu_custom_call.1} parent=5 // pred_check
        _
      $region10: #{tpu_custom_call.1} parent=5 // pred_check_branch
        %213 = sbr.rel (%p210) target = $region12
      $region11: #{tpu_custom_call.1} parent=5 // pred_region
        %s214 = ssub.s32 %s24, 1
      $region12: #{tpu_custom_call.1} parent=5 // pred_fallthru
        _
      %p215 = scmp.lt.s32.totalorder %s24, 2
      // Predicated region
      $region13: #{tpu_custom_call.1} parent=5 // pred_check
        %p216 = pneg %p215
      $region14: #{tpu_custom_call.1} parent=5 // pred_check_branch
        %218 = sbr.rel (%p216) target = $region16
      $region15: #{tpu_custom_call.1} parent=5 // pred_region
        // Predicated region
        $region17: #{tpu_custom_call.1} parent=15 // pred_check
          %p219 = pneg %p58
        $region18: #{tpu_custom_call.1} parent=15 // pred_check_branch
          %221 = sbr.rel (%p219) target = $region20
        $region19: #{tpu_custom_call.1} parent=15 // pred_region
          %p222 = scmp.lt.s32.totalorder %s31, 1
          %s223 = scalar_select %p222, %s31, 1
          %p224 = scmp.lt.s32.totalorder %s32, 0
          %s225 = scalar_select %p224, %s32, 0
          %s226 = sadd.s32 %s225, %s223
          %s227 = smul.addr %s226, 8
          %s228 = scalar_lea.vmem %s0, %s227
        $region20: #{tpu_custom_call.1} parent=15 // pred_fallthru
          _
        // Predicated region
        $region21: #{tpu_custom_call.1} parent=15 // pred_check
          %p229 = pneg %p84
        $region22: #{tpu_custom_call.1} parent=15 // pred_check_branch
          %231 = sbr.rel (%p229) target = $region24
        $region23: #{tpu_custom_call.1} parent=15 // pred_region
          %s232 = sand.u32 %s74, 1
          %s233 = scalar_lea.sflag [#allocation3], %s232
          %s234 = sand.u32 %s74, 1
          %s235 = smul.addr %s234, 8
          %s236 = scalar_lea.vmem [#allocation2], %s235
          %s238 = ssub.s32 128, 128
          %239 = vsyncadd %s233, %s238
          %s240 = smul.addr %s31, 128
          %s241 = scalar_lea.hbm %s1, %s240
          %s243 = sshll.u32 %s236, 4
          %s244 = int_to_ptr.vmem [resolvable:$true] %s243
          %246 = dma.hbm_to_vmem [thread:$0]  %s241, 128, %s244, %s233
        $region24: #{tpu_custom_call.1} parent=15 // pred_fallthru
          _
        // Predicated region
        $region25: #{tpu_custom_call.1} parent=15 // pred_check
          %p247 = pneg %p110
        $region26: #{tpu_custom_call.1} parent=15 // pred_check_branch
          %249 = sbr.rel (%p247) target = $region28
        $region27: #{tpu_custom_call.1} parent=15 // pred_region
          %s250 = sand.u32 %s100, 1
          %s251 = scalar_lea.sflag [#allocation6], %s250
          %s252 = sand.u32 %s100, 1
          %s253 = smul.addr %s252, 8
          %s254 = scalar_lea.vmem [#allocation5], %s253
          %s256 = ssub.s32 128, 128
          %257 = vsyncadd %s251, %s256
          %s258 = smul.addr %s31, 128
          %s259 = scalar_lea.hbm %s2, %s258
          %s261 = sshll.u32 %s254, 4
          %s262 = int_to_ptr.vmem [resolvable:$true] %s261
          %264 = dma.hbm_to_vmem [thread:$0]  %s259, 128, %s262, %s251
        $region28: #{tpu_custom_call.1} parent=15 // pred_fallthru
          _
        // Predicated region
        $region29: #{tpu_custom_call.1} parent=15 // pred_check
          %p265 = pneg %p138
        $region30: #{tpu_custom_call.1} parent=15 // pred_check_branch
          %267 = sbr.rel (%p265) target = $region32
        $region31: #{tpu_custom_call.1} parent=15 // pred_region
          %p268 = scmp.lt.s32.totalorder %s31, 1
          %s269 = scalar_select %p268, %s31, 1
          %p270 = scmp.lt.s32.totalorder %s32, 0
          %s271 = scalar_select %p270, %s32, 0
          %s272 = sadd.s32 %s271, %s269
          %s273 = smul.addr %s272, 8
          %s274 = scalar_lea.vmem %s3, %s273
        $region32: #{tpu_custom_call.1} parent=15 // pred_fallthru
          _
      $region16: #{tpu_custom_call.1} parent=5 // pred_fallthru
        _
      %p275 = scmp.le.s32.totalorder 1, %s24
      %p276 = scmp.lt.s32.totalorder %s24, 3
      %p277 = pnand %p275, %p276
      %p278 = pneg %p277
      // Predicated region
      $region33: #{tpu_custom_call.1} parent=5 // pred_check
        _
      $region34: #{tpu_custom_call.1} parent=5 // pred_check_branch
        %280 = sbr.rel (%p277) target = $region36
      $region35: #{tpu_custom_call.1} parent=5 // pred_region
        %s281 = ssub.s32 %s24, 1
        %s282 = sand.u32 %s77, 1
        %s283 = scalar_lea.sflag [#allocation3], %s282
        %s284 = sand.u32 %s77, 1
        %s285 = smul.addr %s284, 8
        %s286 = scalar_lea.vmem [#allocation2], %s285
        // Predicated region
        $region37: #{tpu_custom_call.1} parent=35 // pred_check
          %p287 = pneg %p90
        $region38: #{tpu_custom_call.1} parent=35 // pred_check_branch
          %289 = sbr.rel (%p287) target = $region40
        $region39: #{tpu_custom_call.1} parent=35 // pred_region
          %290 = dma.done %s283, 128
        $region40: #{tpu_custom_call.1} parent=35 // pred_fallthru
          _
        %s291 = sand.u32 %s103, 1
        %s292 = scalar_lea.sflag [#allocation6], %s291
        %s293 = sand.u32 %s103, 1
        %s294 = smul.addr %s293, 8
        %s295 = scalar_lea.vmem [#allocation5], %s294
        // Predicated region
        $region41: #{tpu_custom_call.1} parent=35 // pred_check
          %p296 = pneg %p116
        $region42: #{tpu_custom_call.1} parent=35 // pred_check_branch
          %298 = sbr.rel (%p296) target = $region44
        $region43: #{tpu_custom_call.1} parent=35 // pred_region
          %299 = dma.done %s292, 128
        $region44: #{tpu_custom_call.1} parent=35 // pred_fallthru
          _
        %p300 = scmp.lt.s32.totalorder %s33, 1
        %s301 = scalar_select %p300, %s33, 1
        %p302 = scmp.lt.s32.totalorder %s34, 0
        %s303 = scalar_select %p302, %s34, 0
        %s304 = sadd.s32 %s303, %s301
        %s305 = smul.addr %s304, 8
        %s306 = scalar_lea.vmem %s0, %s305
        %p307 = pneg %p64
        %p308 = pneg %p61
        %s309 = sand.u32 %s77, 1
        %s310 = scalar_lea.sflag [#allocation3], %s309
        %s311 = sand.u32 %s77, 1
        %s312 = smul.addr %s311, 8
        %s313 = scalar_lea.vmem [#allocation2], %s312
        %p314 = pneg %p90
        %p315 = pneg %p87
        %s316 = sand.u32 %s103, 1
        %s317 = scalar_lea.sflag [#allocation6], %s316
        %s318 = sand.u32 %s103, 1
        %s319 = smul.addr %s318, 8
        %s320 = scalar_lea.vmem [#allocation5], %s319
        %p321 = pneg %p116
        %p322 = pneg %p113
        %p323 = scmp.lt.s32.totalorder %s33, 1
        %s324 = scalar_select %p323, %s33, 1
        %p325 = scmp.lt.s32.totalorder %s34, 0
        %s326 = scalar_select %p325, %s34, 0
        %s327 = sadd.s32 %s326, %s324
        %s328 = smul.addr %s327, 8
        %s329 = scalar_lea.vmem %s3, %s328
        %p330 = pneg %p144
        %p331 = pneg %p141
        %p332 = pneg %p172
        %p333 = pneg %p169
        %s334 = sand.u32 %s159, 1
        %s335 = scalar_lea.sflag [#allocation4], %s334
        %s336 = sand.u32 %s159, 1
        %s337 = smul.addr %s336, 8
        %s338 = scalar_lea.vmem [#allocation7], %s337
        %p339 = pneg %p200
        %p340 = pneg %p197
        %s341 = sand.u32 %s187, 1
        %s342 = scalar_lea.sflag [#allocation9], %s341
        %s343 = sand.u32 %s187, 1
        %s344 = smul.addr %s343, 8
        %s345 = scalar_lea.vmem [#allocation8], %s344
        %p346 = scmp.lt.s32.totalorder %s33, 1
        %s347 = scalar_select %p346, %s33, 1
        %p348 = scmp.lt.s32.totalorder %s34, 0
        %s349 = scalar_select %p348, %s34, 0
        %s350 = sadd.s32 %s349, %s347
        %s351 = smul.addr %s350, 8
        %s352 = scalar_lea.vmem %s0, %s351
        %p353 = scmp.lt.s32.totalorder %s33, 1
        %s354 = scalar_select %p353, %s33, 1
        %p355 = scmp.lt.s32.totalorder %s34, 0
        %s356 = scalar_select %p355, %s34, 0
        %s357 = sadd.s32 %s356, %s354
        %s358 = smul.addr %s357, 8
        %s359 = scalar_lea.vmem %s3, %s358
        %v360 = vld [vmem:[%s352] sm:$0xff]
        %v361 = vld [vmem:[%s286] sm:$0xff]
        %v362 = vld [vmem:[%s295] sm:$0xff]
        %v363 = vmul.f32 %v360, 0.17677669
        %vm364 = vcmask 261120
        %v366 = vsel %vm364, %v363, 0
        %v369 = vsel %vm364, %v361, 0
        %371 = vmatprep.subr.mxu0 0.0
        %372 = vmatpush1.xpose.msra.mxu0 %v369
        %373 = vmatprep.subr.mxu0 0.0
        %374 = vmatpush1.xpose.msra.mxu0 0.0
        %375 = vmatprep.subr.mxu0 0.0
        %376 = vmatpush1.xpose.msra.mxu0 0.0
        %377 = vmatprep.subr.mxu0 0.0
        %378 = vmatpush1.xpose.msra.mxu0 0.0
        %379 = vmatprep.subr.mxu0 0.0
        %380 = vmatpush1.xpose.msra.mxu0 0.0
        %381 = vmatprep.subr.mxu0 0.0
        %382 = vmatpush1.xpose.msra.mxu0 0.0
        %383 = vmatprep.subr.mxu0 0.0
        %384 = vmatpush1.xpose.msra.mxu0 0.0
        %385 = vmatprep.subr.mxu0 0.0
        %386 = vmatpush1.xpose.msra.mxu0 0.0
        %387 = vmatprep.subr.mxu0 0.0
        %388 = vmatpush1.xpose.msra.mxu0 0.0
        %389 = vmatprep.subr.mxu0 0.0
        %390 = vmatpush1.xpose.msra.mxu0 0.0
        %391 = vmatprep.subr.mxu0 0.0
        %392 = vmatpush1.xpose.msra.mxu0 0.0
        %393 = vmatprep.subr.mxu0 0.0
        %394 = vmatpush1.xpose.msra.mxu0 0.0
        %395 = vmatprep.subr.mxu0 0.0
        %396 = vmatpush1.xpose.msra.mxu0 0.0
        %397 = vmatprep.subr.mxu0 0.0
        %398 = vmatpush1.xpose.msra.mxu0 0.0
        %399 = vmatprep.subr.mxu0 0.0
        %400 = vmatpush1.xpose.msra.mxu0 0.0
        %401 = vmatprep.subr.mxu0 0.0
        %402 = vmatpush1.xpose.msra.mxu0 0.0
        %403 = vmatprep.subr.mxu0 0.0
        %404 = vmatpush1.xpose.msra.mxu0 0.0
        %405 = vmatprep.subr.mxu0 0.0
        %406 = vmatpush1.xpose.msra.mxu0 0.0
        %407 = vmatprep.subr.mxu0 0.0
        %408 = vmatpush1.xpose.msra.mxu0 0.0
        %409 = vmatprep.subr.mxu0 0.0
        %410 = vmatpush1.xpose.msra.mxu0 0.0
        %411 = vmatprep.subr.mxu0 0.0
        %412 = vmatpush1.xpose.msra.mxu0 0.0
        %413 = vmatprep.subr.mxu0 0.0
        %414 = vmatpush1.xpose.msra.mxu0 0.0
        %415 = vmatprep.subr.mxu0 0.0
        %416 = vmatpush1.xpose.msra.mxu0 0.0
        %417 = vmatprep.subr.mxu0 0.0
        %418 = vmatpush1.xpose.msra.mxu0 0.0
        %419 = vmatprep.subr.mxu0 0.0
        %420 = vmatpush1.xpose.msra.mxu0 0.0
        %421 = vmatprep.subr.mxu0 0.0
        %422 = vmatpush1.xpose.msra.mxu0 0.0
        %423 = vmatprep.subr.mxu0 0.0
        %424 = vmatpush1.xpose.msra.mxu0 0.0
        %425 = vmatprep.subr.mxu0 0.0
        %426 = vmatpush1.xpose.msra.mxu0 0.0
        %427 = vmatprep.subr.mxu0 0.0
        %428 = vmatpush1.xpose.msra.mxu0 0.0
        %429 = vmatprep.subr.mxu0 0.0
        %430 = vmatpush1.xpose.msra.mxu0 0.0
        %431 = vmatprep.subr.mxu0 0.0
        %432 = vmatpush1.xpose.msra.mxu0 0.0
        %433 = vmatprep.subr.mxu0 0.0
        %434 = vmatpush1.xpose.msra.mxu0 0.0
        %435 = vmatprep.mubr.f32.mxu0 0.0
        %436 = vmatmul.mubr.f32.gmra.mrb[0].mxu0 %v366
        %v437 = vpop.f32.mrb[0].mxu0
        %v438 = vadd.f32 0.0, %v437
        %v439 = vpop.f32.mrb[0].mxu0
        %440 = vdwg.mxu0
        %v441 = vld [vmem:[%s359] sm:$0xff]
        %vm442 = vcmp.ne.s32.totalorder %v441, 0
        %v443 = vsel %vm442, -1e+10, %v438
        %vm444 = vcmask 64512
        %v445 = vsel %vm444, %v443, -inf
        %446 = vmax.xlane.f32.xlu0 %v445
        %v447 = vpop.xlane.xlu0 %446
        %v448 = vsub.f32 %v443, %v447
        %v449 = vmul.f32 %v448, 1.442695
        %v450 = vpow.pop %v449
        %v451 = vsel %vm444, %v450, 0.0
        %452 = vadd.xlane.f32.xlu0 %v451
        %v453 = vpop.xlane.xlu0 %452
        %v454 = vrcp.pop %v453
        %v455 = vmul.f32 %v453, %v454
        %v456 = vsub.f32 2.0, %v455
        %v457 = vmul.f32 %v454, %v456
        %v458 = vmul.f32 %v450, %v457
        %v460 = vsel %vm444, %v458, 0
        %462 = vmatprep.subr.mxu0 0.0
        %463 = vmatpush1.msra.mxu0 %v362
        %464 = vmatprep.subr.mxu0 0.0
        %465 = vmatpush1.msra.mxu0 0.0
        %466 = vmatprep.subr.mxu0 0.0
        %467 = vmatpush1.msra.mxu0 0.0
        %468 = vmatprep.subr.mxu0 0.0
        %469 = vmatpush1.msra.mxu0 0.0
        %470 = vmatprep.subr.mxu0 0.0
        %471 = vmatpush1.msra.mxu0 0.0
        %472 = vmatprep.subr.mxu0 0.0
        %473 = vmatpush1.msra.mxu0 0.0
        %474 = vmatprep.subr.mxu0 0.0
        %475 = vmatpush1.msra.mxu0 0.0
        %476 = vmatprep.subr.mxu0 0.0
        %477 = vmatpush1.msra.mxu0 0.0
        %478 = vmatprep.subr.mxu0 0.0
        %479 = vmatpush1.msra.mxu0 0.0
        %480 = vmatprep.subr.mxu0 0.0
        %481 = vmatpush1.msra.mxu0 0.0
        %482 = vmatprep.subr.mxu0 0.0
        %483 = vmatpush1.msra.mxu0 0.0
        %484 = vmatprep.subr.mxu0 0.0
        %485 = vmatpush1.msra.mxu0 0.0
        %486 = vmatprep.subr.mxu0 0.0
        %487 = vmatpush1.msra.mxu0 0.0
        %488 = vmatprep.subr.mxu0 0.0
        %489 = vmatpush1.msra.mxu0 0.0
        %490 = vmatprep.subr.mxu0 0.0
        %491 = vmatpush1.msra.mxu0 0.0
        %492 = vmatprep.subr.mxu0 0.0
        %493 = vmatpush1.msra.mxu0 0.0
        %494 = vmatprep.subr.mxu0 0.0
        %495 = vmatpush1.msra.mxu0 0.0
        %496 = vmatprep.subr.mxu0 0.0
        %497 = vmatpush1.msra.mxu0 0.0
        %498 = vmatprep.subr.mxu0 0.0
        %499 = vmatpush1.msra.mxu0 0.0
        %500 = vmatprep.subr.mxu0 0.0
        %501 = vmatpush1.msra.mxu0 0.0
        %502 = vmatprep.subr.mxu0 0.0
        %503 = vmatpush1.msra.mxu0 0.0
        %504 = vmatprep.subr.mxu0 0.0
        %505 = vmatpush1.msra.mxu0 0.0
        %506 = vmatprep.subr.mxu0 0.0
        %507 = vmatpush1.msra.mxu0 0.0
        %508 = vmatprep.subr.mxu0 0.0
        %509 = vmatpush1.msra.mxu0 0.0
        %510 = vmatprep.subr.mxu0 0.0
        %511 = vmatpush1.msra.mxu0 0.0
        %512 = vmatprep.subr.mxu0 0.0
        %513 = vmatpush1.msra.mxu0 0.0
        %514 = vmatprep.subr.mxu0 0.0
        %515 = vmatpush1.msra.mxu0 0.0
        %516 = vmatprep.subr.mxu0 0.0
        %517 = vmatpush1.msra.mxu0 0.0
        %518 = vmatprep.subr.mxu0 0.0
        %519 = vmatpush1.msra.mxu0 0.0
        %520 = vmatprep.subr.mxu0 0.0
        %521 = vmatpush1.msra.mxu0 0.0
        %522 = vmatprep.subr.mxu0 0.0
        %523 = vmatpush1.msra.mxu0 0.0
        %524 = vmatprep.subr.mxu0 0.0
        %525 = vmatpush1.msra.mxu0 0.0
        %526 = vmatprep.mubr.f32.mxu0 0.0
        %527 = vmatmul.mubr.f32.gmra.mrb[0].mxu0 %v460
        %v528 = vpop.f32.mrb[0].mxu0
        %v529 = vadd.f32 0.0, %v528
        %v530 = vpop.f32.mrb[0].mxu0
        %531 = vdwg.mxu0
        %532 = vst.msk [vmem:[%s338] sm:$0xff] %vm364, %v529
        %533 = vst.msk [vmem:[%s345] sm:$0xff] %vm444, %v458
        %s534 = sand.u32 %s159, 1
        %s535 = scalar_lea.sflag [#allocation4], %s534
        %s536 = sand.u32 %s159, 1
        %s537 = smul.addr %s536, 8
        %s538 = scalar_lea.vmem [#allocation7], %s537
        %s539 = sand.u32 %s187, 1
        %s540 = scalar_lea.sflag [#allocation9], %s539
        %s541 = sand.u32 %s187, 1
        %s542 = smul.addr %s541, 8
        %s543 = scalar_lea.vmem [#allocation8], %s542
        // Predicated region
        $region45: #{tpu_custom_call.1} parent=35 // pred_check
          %p544 = pneg %p169
        $region46: #{tpu_custom_call.1} parent=35 // pred_check_branch
          %546 = sbr.rel (%p544) target = $region48
        $region47: #{tpu_custom_call.1} parent=35 // pred_region
          %s548 = ssub.s32 128, 128
          %549 = vsyncadd %s535, %s548
          %s550 = sadd.s32 %s34, %s33
          %s551 = smul.addr %s550, 128
          %s552 = scalar_lea.hbm %s4, %s551
          %s554 = sshll.u32 %s538, 4
          %s555 = int_to_ptr.vmem [resolvable:$true] %s554
          %557 = dma.vmem_to_hbm [thread:$0]  %s555, 128, %s552, %s535
        $region48: #{tpu_custom_call.1} parent=35 // pred_fallthru
          _
        // Predicated region
        $region49: #{tpu_custom_call.1} parent=35 // pred_check
          %p558 = pneg %p197
        $region50: #{tpu_custom_call.1} parent=35 // pred_check_branch
          %560 = sbr.rel (%p558) target = $region52
        $region51: #{tpu_custom_call.1} parent=35 // pred_region
          %s562 = ssub.s32 128, 128
          %563 = vsyncadd %s540, %s562
          %s564 = sadd.s32 %s34, %s33
          %s565 = smul.addr %s564, 128
          %s566 = scalar_lea.hbm %s5, %s565
          %s568 = sshll.u32 %s543, 4
          %s569 = int_to_ptr.vmem [resolvable:$true] %s568
          %571 = dma.vmem_to_hbm [thread:$0]  %s569, 128, %s566, %s540
        $region52: #{tpu_custom_call.1} parent=35 // pred_fallthru
          _
      $region36: #{tpu_custom_call.1} parent=5 // pred_fallthru
        _
      %p572 = scmp.le.s32.totalorder 2, %s24
      // Predicated region
      $region53: #{tpu_custom_call.1} parent=5 // pred_check
        %p573 = pneg %p572
      $region54: #{tpu_custom_call.1} parent=5 // pred_check_branch
        %575 = sbr.rel (%p573) target = $region56
      $region55: #{tpu_custom_call.1} parent=5 // pred_region
        %s576 = ssub.s32 %s24, 2
        // Predicated region
        $region57: #{tpu_custom_call.1} parent=55 // pred_check
          %p577 = pneg %p175
        $region58: #{tpu_custom_call.1} parent=55 // pred_check_branch
          %579 = sbr.rel (%p577) target = $region60
        $region59: #{tpu_custom_call.1} parent=55 // pred_region
          %s580 = sand.u32 %s160, 1
          %s581 = scalar_lea.sflag [#allocation4], %s580
          %s582 = sand.u32 %s160, 1
          %s583 = smul.addr %s582, 8
          %s584 = scalar_lea.vmem [#allocation7], %s583
          %585 = dma.done %s581, 128
        $region60: #{tpu_custom_call.1} parent=55 // pred_fallthru
          _
        // Predicated region
        $region61: #{tpu_custom_call.1} parent=55 // pred_check
          %p586 = pneg %p203
        $region62: #{tpu_custom_call.1} parent=55 // pred_check_branch
          %588 = sbr.rel (%p586) target = $region64
        $region63: #{tpu_custom_call.1} parent=55 // pred_region
          %s589 = sand.u32 %s188, 1
          %s590 = scalar_lea.sflag [#allocation9], %s589
          %s591 = sand.u32 %s188, 1
          %s592 = smul.addr %s591, 8
          %s593 = scalar_lea.vmem [#allocation8], %s592
          %594 = dma.done %s590, 128
        $region64: #{tpu_custom_call.1} parent=55 // pred_fallthru
          _
      $region56: #{tpu_custom_call.1} parent=5 // pred_fallthru
        _
    $region6: #{tpu_custom_call.1} parent=1 // loop_footer
      %s28 = sadd.s32 1, %s24
    $region7: #{tpu_custom_call.1} parent=1 // loop_footer_branch
      %23 = sbr.rel target = $region3
    $region8: #{tpu_custom_call.1} parent=1 // loop_exit
      _
    %595 = vsyncpa [#allocation3], 1
    %s596 = scalar_lea.sflag [#allocation3], 1
    %597 = vsyncpa %s596, 1
    %598 = vsyncpa [#allocation6], 1
    %s599 = scalar_lea.sflag [#allocation6], 1
    %600 = vsyncpa %s599, 1
    %601 = vsyncpa [#allocation4], 1
    %s602 = scalar_lea.sflag [#allocation4], 1
    %603 = vsyncpa %s602, 1
    %604 = vsyncpa [#allocation9], 1
    %s605 = scalar_lea.sflag [#allocation9], 1
    %606 = vsyncpa %s605, 1

</llo_original>
